<compile_context>
chip_gen: v7x
topology: tpu7x:2x2x1
jax: 0.10.0
libtpu: 0.0.40
codegen_flags: <defaults>
</compile_context>

<pallas_src>
import numpy as np
import jax
import jax.numpy as jnp
from jax.experimental import pallas as pl
from jax.experimental.pallas import tpu as pltpu

NEG_INF = float(-2.0 ** 32 + 1)   # torch pad value for masked attention logits
SLOPE = 0.01                      # LeakyReLU default negative_slope


def _leaky(x):
    return jnp.where(x >= 0.0, x, SLOPE * x)


def _round_up(x, m):
    return ((x + m - 1) // m) * m


def _pad2(a, rows, cols):
    return jnp.zeros((rows, cols), a.dtype).at[:a.shape[0], :a.shape[1]].set(a)


# ------------------------------ Pallas kernels ------------------------------

def _gcn_fused_kernel(adj_ref, x0_ref, w_ref, b_ref, enc_ref):
    # grid=(n_layers,): adj / x0 / enc blocks are identical every step -> resident
    # in VMEM; w_ref/b_ref stream one layer's weights per step.
    layer = pl.program_id(0)

    @pl.when(layer == 0)
    def _():
        enc_ref[...] = x0_ref[...]

    x = enc_ref[...]
    side = jnp.dot(adj_ref[...], x, preferred_element_type=jnp.float32)
    h = jnp.dot(side, w_ref[0], preferred_element_type=jnp.float32) + b_ref[0]
    h = _leaky(h)
    ss = jnp.sum(h * h, axis=-1, keepdims=True)
    # F.normalize(dim=-1) parity: clamp sum-of-squares at eps^2 (eps = 1e-12)
    enc_ref[...] = h * jax.lax.rsqrt(jnp.maximum(ss, 1e-24))


def _attn_heads_kernel(v_ref, tar_ref, mask_ref, invlen_ref,
                       kwt_ref, kb_ref, qwt_ref, qb_ref, vwt_ref, vb_ref,
                       p1wt_ref, p1b_ref, p2wt_ref, p2b_ref,
                       d1a_ref, d1t_ref, d1b_ref, d2wt_ref, d2b_ref,
                       proj_ref, logit_ref):
    # HardAttn.forward + split_mean + proj_head + predictor, all fused.
    v = v_ref[...]                         # (BP, L, DP) gathered session feats
    mask = mask_ref[...]                   # (BP, L) 1.0 valid / 0.0 pad
    tar = tar_ref[...]                     # (BP, DP) target embeddings
    BP, L, DP = v.shape

    # K projection as one dense 2-D MXU matmul (no broadcast weight)
    kv = (jnp.dot(v.reshape(BP * L, DP), kwt_ref[...],
                  preferred_element_type=jnp.float32)
          + kb_ref[...]).reshape(BP, L, DP)
    # Q projection of the target embedding
    qp = jnp.dot(tar, qwt_ref[...], preferred_element_type=jnp.float32) + qb_ref[...]

    # masked softmax over the session axis (pad positions get exactly 0 weight)
    scores = jnp.sum(kv * qp[:, None, :], axis=-1)                 # (BP, L)
    scores = jnp.where(mask > 0.5, scores, jnp.float32(NEG_INF))
    m = jnp.max(scores, axis=-1, keepdims=True)
    e = jnp.exp(scores - m)
    w = e * pl.reciprocal(jnp.sum(e, axis=-1, keepdims=True), approx=True)

    # attention-weighted sum of the K-projected feats (VPU mul + reduce, M=1 MXU avoided)
    seq_feat = jnp.sum(kv * w[:, :, None], axis=1)                 # (BP, DP)
    aggr = jnp.dot(seq_feat, vwt_ref[...],
                   preferred_element_type=jnp.float32) + vb_ref[...]

    # split_mean on the raw (masked) session features
    mean = jnp.sum(v * mask[:, :, None], axis=1) * invlen_ref[...]

    # proj_head: Linear -> LeakyReLU -> Linear
    h1 = _leaky(jnp.dot(mean, p1wt_ref[...],
                        preferred_element_type=jnp.float32) + p1b_ref[...])
    proj_ref[...] = jnp.dot(h1, p2wt_ref[...],
                            preferred_element_type=jnp.float32) + p2b_ref[...]

    # predictor on concat([aggr, tar]) without materializing the concat:
    # W1 split into an aggr-half and a tar-half.
    h2 = _leaky(jnp.dot(aggr, d1a_ref[...], preferred_element_type=jnp.float32)
                + jnp.dot(tar, d1t_ref[...], preferred_element_type=jnp.float32)
                + d1b_ref[...])
    logit_ref[...] = jnp.dot(h2, d2wt_ref[...],
                             preferred_element_type=jnp.float32) + d2b_ref[...]


# ------------------------------ pallas_call glue -----------------------------

def _full_spec(shape):
    nd = len(shape)
    return pl.BlockSpec(tuple(shape), lambda *_, _nd=nd: (0,) * _nd)


def _run_gcn(adj, x0, w_stack, b_stack):
    NP, DP = x0.shape
    n_layers = w_stack.shape[0]
    return pl.pallas_call(
        _gcn_fused_kernel,
        grid=(n_layers,),
        in_specs=[
            pl.BlockSpec((NP, NP), lambda l: (0, 0)),        # adj: resident
            pl.BlockSpec((NP, DP), lambda l: (0, 0)),        # x0:  resident
            pl.BlockSpec((1, DP, DP), lambda l: (l, 0, 0)),  # per-layer weight
            pl.BlockSpec((1, 1, DP), lambda l: (l, 0, 0)),   # per-layer bias
        ],
        out_specs=pl.BlockSpec((NP, DP), lambda l: (0, 0)),  # enc: resident accumulator
        out_shape=jax.ShapeDtypeStruct((NP, DP), jnp.float32),
        compiler_params=pltpu.CompilerParams(
            dimension_semantics=("arbitrary",),
            vmem_limit_bytes=48 * 1024 * 1024),
    )(adj, x0, w_stack, b_stack)


# ------------------------------ model wrapper --------------------------------

def build_dense_adj(edge_index, dist_vec, n_poi, n_pad):
    # Geo_GCN preamble: degree normalization + exp(-dist^2) weights, densified
    # directly at the lane-padded size (padded rows/cols are zero). Duplicate
    # edges are summed, matching torch sparse coalescing.
    row, col = edge_index[0], edge_index[1]
    deg = jnp.zeros((n_poi,), jnp.float32).at[col].add(1.0)
    dis = jnp.where(deg > 0, deg ** -0.5, 0.0)
    norm = dis[row] * dis[col]
    vals = jnp.exp(-dist_vec ** 2) * norm
    return jnp.zeros((n_pad, n_pad), jnp.float32).at[row, col].add(vals)


def geograph_forward(poi_weight, edge_index, dist_vec, x_idx, poi_idx, sections, params):
    n_poi, D = poi_weight.shape
    DP = _round_up(D, 128)                     # lane-dense embedding dim
    NP = _round_up(n_poi, 128)                 # lane-dense adjacency dim
    CP = 128                                   # lane-dense logit output
    B = len(sections)
    BP = _round_up(max(B, 8), 8)
    seq_lens = np.asarray(sections, np.int64)
    max_len = int(seq_lens.max())
    L = _round_up(max(max_len, 8), 8)

    # ---- dense normalized adjacency + padded initial embeddings ----
    adj = build_dense_adj(edge_index, dist_vec, n_poi, NP)
    x0 = _pad2(poi_weight, NP, DP)

    # ---- fused multi-layer GCN (single pallas_call) ----
    w_stack = jnp.stack([_pad2(w.T, DP, DP) for (w, _b) in params['gcn']])
    b_stack = jnp.stack([_pad2(b.reshape(1, -1), 1, DP) for (_w, b) in params['gcn']])
    enc = _run_gcn(adj, x0, w_stack, b_stack)          # (NP, DP)

    # ---- gathers + torch.split/pad_sequence glue (static sections) ----
    # TODO(synk): these tiny gathers could move in-kernel via scalar-prefetch index
    # tables; kept as XLA gathers here.
    poi_idx_p = jnp.zeros((BP,), jnp.int32).at[:B].set(poi_idx.astype(jnp.int32))
    tar = enc[poi_idx_p]                               # (BP, DP)  == enc[data.poi]
    geo = enc[x_idx]                                   # (T, DP)   == enc[data.x]

    offs = np.concatenate([[0], np.cumsum(seq_lens)])[:B].astype(np.int64)
    valid = np.arange(L)[None, :] < seq_lens[:, None]
    idx = np.zeros((BP, L), np.int32)
    idx[:B] = np.where(valid, offs[:, None] + np.arange(L)[None, :], 0)
    mask_np = np.zeros((BP, L), np.float32)
    mask_np[:B] = valid.astype(np.float32)
    mask = jnp.asarray(mask_np)
    v_pad = geo[jnp.asarray(idx)]                      # (BP, L, DP); pads masked in-kernel
    invlen_np = np.ones((BP, 1), np.float32)
    invlen_np[:B, 0] = 1.0 / seq_lens
    invlen = jnp.asarray(invlen_np)

    # ---- padded / pre-transposed attention + head weights ----
    a = params['attn']
    kwt, kb = _pad2(a['Kw'].T, DP, DP), _pad2(a['Kb'].reshape(1, -1), 1, DP)
    qwt, qb = _pad2(a['Qw'].T, DP, DP), _pad2(a['Qb'].reshape(1, -1), 1, DP)
    vwt, vb = _pad2(a['Vw'].T, DP, DP), _pad2(a['Vb'].reshape(1, -1), 1, DP)
    pr = params['proj']
    p1wt, p1b = _pad2(pr['w1'].T, DP, DP), _pad2(pr['b1'].reshape(1, -1), 1, DP)
    p2wt, p2b = _pad2(pr['w2'].T, DP, DP), _pad2(pr['b2'].reshape(1, -1), 1, DP)
    pd = params['pred']
    w1t = pd['w1'].T                                   # (2D, D)
    d1a = _pad2(w1t[:D], DP, DP)                       # multiplies aggr (first half of concat)
    d1t = _pad2(w1t[D:], DP, DP)                       # multiplies tar  (second half of concat)
    d1b = _pad2(pd['b1'].reshape(1, -1), 1, DP)
    d2wt = _pad2(pd['w2'].T, DP, CP)
    d2b = _pad2(pd['b2'].reshape(1, -1), 1, CP)

    args = (v_pad, tar, mask, invlen,
            kwt, kb, qwt, qb, vwt, vb,
            p1wt, p1b, p2wt, p2b,
            d1a, d1t, d1b, d2wt, d2b)

    proj_p, logit_p = pl.pallas_call(
        _attn_heads_kernel,
        grid=(1,),
        in_specs=[_full_spec(x.shape) for x in args],
        out_specs=(_full_spec((BP, DP)), _full_spec((BP, CP))),
        out_shape=(jax.ShapeDtypeStruct((BP, DP), jnp.float32),
                   jax.ShapeDtypeStruct((BP, CP), jnp.float32)),
        compiler_params=pltpu.CompilerParams(dimension_semantics=("arbitrary",)),
    )(*args)

    return proj_p[:B, :D], logit_p[:B, :1], tar[:B, :D]


# ------------------------------ param init -----------------------------------

def _xavier_normal(key, fan_out, fan_in):
    std = (2.0 / (fan_in + fan_out)) ** 0.5
    return std * jax.random.normal(key, (fan_out, fan_in), jnp.float32)


def _bias(key, fan_out, fan_in):
    bound = 1.0 / (fan_in ** 0.5)
    return jax.random.uniform(key, (fan_out,), jnp.float32, -bound, bound)


if __name__ == "__main__":
    key = jax.random.PRNGKey(0)
    n_poi, embed_dim, gcn_num = 64, 32, 2
    sections = (5, 3, 4, 4)                 # torch.bincount(data.batch)
    B = len(sections)
    T = int(sum(sections))
    n_edges = 96

    keys = jax.random.split(key, 24)

    # inputs the torch module sees
    poi_weight = 0.1 * jax.random.normal(keys[0], (n_poi, embed_dim), jnp.float32)
    e_row = jax.random.randint(keys[1], (n_edges,), 0, n_poi)
    e_col = jax.random.randint(keys[2], (n_edges,), 0, n_poi)
    dist_edges = jnp.stack([e_row, e_col])                       # (2, E)
    dist_vec = jax.random.uniform(keys[3], (n_edges,), jnp.float32)

    # __init__ edge augmentation: reverse edges + self loops (zero distance)
    loop = jnp.arange(n_poi)
    edge_index = jnp.concatenate(
        [dist_edges, dist_edges[::-1], jnp.stack([loop, loop])], axis=1)
    dist_full = jnp.concatenate(
        [dist_vec, dist_vec, jnp.zeros((n_poi,), jnp.float32)])

    x_idx = jax.random.randint(keys[4], (T,), 0, n_poi)          # data.x.squeeze()
    poi_idx = jax.random.randint(keys[5], (B,), 0, n_poi)        # data.poi

    # parameters in torch layout: W (out, in), b (out,)
    params = {
        'gcn': [(_xavier_normal(keys[6 + 2 * i], embed_dim, embed_dim),
                 _bias(keys[7 + 2 * i], embed_dim, embed_dim))
                for i in range(gcn_num)],
        'attn': {
            'Kw': _xavier_normal(keys[10], embed_dim, embed_dim),
            'Kb': _bias(keys[11], embed_dim, embed_dim),
            'Qw': _xavier_normal(keys[12], embed_dim, embed_dim),
            'Qb': _bias(keys[13], embed_dim, embed_dim),
            'Vw': _xavier_normal(keys[14], embed_dim, embed_dim),
            'Vb': _bias(keys[15], embed_dim, embed_dim),
        },
        'proj': {
            'w1': _xavier_normal(keys[16], embed_dim, embed_dim),
            'b1': _bias(keys[17], embed_dim, embed_dim),
            'w2': _xavier_normal(keys[18], embed_dim, embed_dim),
            'b2': _bias(keys[19], embed_dim, embed_dim),
        },
        'pred': {
            'w1': _xavier_normal(keys[20], embed_dim, 2 * embed_dim),
            'b1': _bias(keys[21], embed_dim, 2 * embed_dim),
            'w2': _xavier_normal(keys[22], 1, embed_dim),
            'b2': _bias(keys[23], 1, embed_dim),
        },
    }

    proj, logits, tar = geograph_forward(
        poi_weight, edge_index, dist_full, x_idx, poi_idx, sections, params)
    jax.block_until_ready((proj, logits, tar))

    assert proj.shape == (B, embed_dim)
    assert logits.shape == (B, 1)
    assert tar.shape == (B, embed_dim)
    assert bool(jnp.all(jnp.isfinite(proj))) and bool(jnp.all(jnp.isfinite(logits)))
    print("KERNEL_OK")
</pallas_src>

<mosaic_0001>
module attributes {stable_mosaic.version = 11 : i64} {
  func.func @_gcn_fused_kernel(%arg0: i32, %arg1: memref<128x128xf32, #tpu.memory_space<vmem>>, %arg2: memref<128x128xf32, #tpu.memory_space<vmem>>, %arg3: memref<1x128x128xf32, #tpu.memory_space<vmem>>, %arg4: memref<1x1x128xf32, #tpu.memory_space<vmem>>, %arg5: memref<128x128xf32, #tpu.memory_space<vmem>>) attributes {dimension_semantics = [#tpu.dimension_semantics<arbitrary>], iteration_bounds = array<i64: 2>, scalar_prefetch = 0 : i64, scratch_operands = 0 : i64, tpu.core_type = #tpu.core_type<tc>, window_params = [{pipeline_mode = #tpu.pipeline_mode<synchronous>, transform_indices = @transform_0, window_bounds = array<i64: 128, 128>}, {pipeline_mode = #tpu.pipeline_mode<synchronous>, transform_indices = @transform_1, window_bounds = array<i64: 128, 128>}, {transform_indices = @transform_2, window_bounds = array<i64: 1, 128, 128>}, {transform_indices = @transform_3, window_bounds = array<i64: 1, 1, 128>}, {pipeline_mode = #tpu.pipeline_mode<synchronous>, transform_indices = @transform_4, window_bounds = array<i64: 128, 128>}]} {
    %c0_i32 = arith.constant 0 : i32
    %0 = arith.cmpi eq, %arg0, %c0_i32 : i32
    %1 = arith.extui %0 : i1 to i32
    %c0_i32_0 = arith.constant 0 : i32
    %2 = arith.cmpi ne, %1, %c0_i32_0 : i32
    scf.if %2 {
      %c0_17 = arith.constant 0 : index
      %c0_18 = arith.constant 0 : index
      %27 = vector.load %arg2[%c0_17, %c0_18] : memref<128x128xf32, #tpu.memory_space<vmem>>, vector<128x128xf32>
      %c0_19 = arith.constant 0 : index
      %c0_20 = arith.constant 0 : index
      %28 = vector.load %arg5[%c0_19, %c0_20] : memref<128x128xf32, #tpu.memory_space<vmem>>, vector<128x128xf32>
      tpu.vector_store %arg5[%c0_19, %c0_20], %27 {strides = array<i32>} : memref<128x128xf32, #tpu.memory_space<vmem>>, vector<128x128xf32>,
    } else {
    }
    %c0 = arith.constant 0 : index
    %c0_1 = arith.constant 0 : index
    %3 = vector.load %arg5[%c0, %c0_1] : memref<128x128xf32, #tpu.memory_space<vmem>>, vector<128x128xf32>
    %c0_2 = arith.constant 0 : index
    %c0_3 = arith.constant 0 : index
    %4 = vector.load %arg1[%c0_2, %c0_3] : memref<128x128xf32, #tpu.memory_space<vmem>>, vector<128x128xf32>
    %cst = arith.constant dense<0.000000e+00> : vector<128x128xf32>
    %5 = tpu.matmul %4, %3, %cst {dimension_numbers = #tpu.dot_dimension_numbers<[1], [0], [0], [1], [0, 0, 1, 1], [], []>} : vector<128x128xf32>, vector<128x128xf32>, vector<128x128xf32> -> vector<128x128xf32>
    %c0_4 = arith.constant 0 : index
    %c0_5 = arith.constant 0 : index
    %c0_6 = arith.constant 0 : index
    %6 = vector.load %arg3[%c0_4, %c0_5, %c0_6] : memref<1x128x128xf32, #tpu.memory_space<vmem>>, vector<1x128x128xf32>
    %7 = vector.shape_cast %6 : vector<1x128x128xf32> to vector<128x128xf32>
    %cst_7 = arith.constant dense<0.000000e+00> : vector<128x128xf32>
    %8 = tpu.matmul %5, %7, %cst_7 {dimension_numbers = #tpu.dot_dimension_numbers<[1], [0], [0], [1], [0, 0, 1, 1], [], []>} : vector<128x128xf32>, vector<128x128xf32>, vector<128x128xf32> -> vector<128x128xf32>
    %c0_8 = arith.constant 0 : index
    %c0_9 = arith.constant 0 : index
    %c0_10 = arith.constant 0 : index
    %9 = vector.load %arg4[%c0_8, %c0_9, %c0_10] : memref<1x1x128xf32, #tpu.memory_space<vmem>>, vector<1x1x128xf32>
    %10 = vector.shape_cast %9 : vector<1x1x128xf32> to vector<1x128xf32>
    %11 = vector.broadcast %10 : vector<1x128xf32> to vector<128x128xf32>
    %12 = arith.addf %8, %11 : vector<128x128xf32>
    %cst_11 = arith.constant 0.000000e+00 : f32
    %13 = vector.broadcast %cst_11 : f32 to vector<128x128xf32>
    %14 = arith.cmpf oge, %12, %13 : vector<128x128xf32>
    %cst_12 = arith.constant 0.00999999977 : f32
    %15 = vector.broadcast %cst_12 : f32 to vector<128x128xf32>
    %16 = arith.mulf %15, %12 : vector<128x128xf32>
    %17 = arith.select %14, %12, %16 : vector<128x128xi1>, vector<128x128xf32>
    %18 = arith.mulf %17, %17 : vector<128x128xf32>
    %cst_13 = arith.constant dense<0.000000e+00> : vector<128xf32>
    %19 = vector.multi_reduction <add>, %18, %cst_13 [1] : vector<128x128xf32> to vector<128xf32>
    %20 = vector.shape_cast %19 : vector<128xf32> to vector<128x1xf32>
    %cst_14 = arith.constant 1.000000e-24 : f32
    %21 = vector.broadcast %cst_14 : f32 to vector<128x1xf32>
    %22 = arith.maximumf %20, %21 : vector<128x1xf32>
    %23 = math.rsqrt %22 : vector<128x1xf32>
    %24 = vector.broadcast %23 : vector<128x1xf32> to vector<128x128xf32>
    %25 = arith.mulf %17, %24 : vector<128x128xf32>
    %c0_15 = arith.constant 0 : index
    %c0_16 = arith.constant 0 : index
    %26 = vector.load %arg5[%c0_15, %c0_16] : memref<128x128xf32, #tpu.memory_space<vmem>>, vector<128x128xf32>
    tpu.vector_store %arg5[%c0_15, %c0_16], %25 {strides = array<i32>} : memref<128x128xf32, #tpu.memory_space<vmem>>, vector<128x128xf32>,
    return
  }
  func.func @transform_0(%arg0: i32) -> (i32, i32) {
    %c0_i32 = arith.constant 0 : i32
    %c0_i32_0 = arith.constant 0 : i32
    %c0_i32_1 = arith.constant 0 : i32
    return %c0_i32, %c0_i32_0 : i32, i32
  }
  func.func @transform_1(%arg0: i32) -> (i32, i32) {
    %c0_i32 = arith.constant 0 : i32
    %c0_i32_0 = arith.constant 0 : i32
    %c0_i32_1 = arith.constant 0 : i32
    return %c0_i32, %c0_i32_0 : i32, i32
  }
  func.func @transform_2(%arg0: i32) -> (i32, i32, i32) {
    %c0_i32 = arith.constant 0 : i32
    %c0_i32_0 = arith.constant 0 : i32
    %c0_i32_1 = arith.constant 0 : i32
    return %arg0, %c0_i32, %c0_i32_0 : i32, i32, i32
  }
  func.func @transform_3(%arg0: i32) -> (i32, i32, i32) {
    %c0_i32 = arith.constant 0 : i32
    %c0_i32_0 = arith.constant 0 : i32
    %c0_i32_1 = arith.constant 0 : i32
    return %arg0, %c0_i32, %c0_i32_0 : i32, i32, i32
  }
  func.func @transform_4(%arg0: i32) -> (i32, i32) {
    %c0_i32 = arith.constant 0 : i32
    %c0_i32_0 = arith.constant 0 : i32
    %c0_i32_1 = arith.constant 0 : i32
    return %c0_i32, %c0_i32_0 : i32, i32
  }
}

</mosaic_0001>

<llo_original>
// kernel: tpu_custom_call.1
$region0: #{tpu_custom_call.1}
  #allocation0 [shape = 'u32[]', space=smem, size = 0x4, offset = 0x4, fixed_abs, tag = 'smem constant byte address 0x4 - core index']
  #allocation1 [shape = 'u32[144,128]{1,0:T(1,128)}', space=vmem, size = 0x12000, scoped, tag = 'internal scratch']
  %s0 = inlined_call_operand.hbm [shape: f32[128,128], index: 0, kind: input, shape index: {}]
  %s1 = inlined_call_operand.hbm [shape: f32[128,128], index: 1, kind: input, shape index: {}]
  %s2 = inlined_call_operand.hbm [shape: f32[2,128,128], index: 2, kind: input, shape index: {}]
  %s3 = inlined_call_operand.vmem [shape: f32[2,1,128], index: 3, kind: input, shape index: {}]
  %s4 = inlined_call_operand.hbm [shape: f32[128,128], index: 4, kind: output, shape index: {}]
  %s5 = sld [smem:[#allocation0]]
  $region65: #{tpu_custom_call.1} parent=0
    _
  %s7 = ssub.s32 1, %s5
  %s8 = scalar_select 0, %s7, %s5
  $region1: #{tpu_custom_call.1} parent=0
    #allocation2 [shape = 'u8[65536]{0}', space=vmem, size = 0x10000, scoped, tag = 'input window, operand 0, single buffered']
    #allocation3 [shape = 's32[2]{0}', space=sflag, size = 0x8, scoped, tag = 'scoped memory for tpu_custom_call.1']
    #allocation4 [shape = 's32[2]{0}', space=sflag, size = 0x8, scoped, tag = 'scoped memory for tpu_custom_call.1']
    #allocation5 [shape = 'u8[65536]{0}', space=vmem, size = 0x10000, scoped, tag = 'input window, operand 1, single buffered']
    #allocation6 [shape = 's32[1]{0}', space=sflag, size = 0x4, scoped, tag = 'scoped memory for tpu_custom_call.1']
    #allocation7 [shape = 'u8[131072]{0}', space=vmem, size = 0x20000, scoped, tag = 'input window, operand 2']
    #allocation8 [shape = 'u8[65536]{0}', space=vmem, size = 0x10000, scoped, tag = 'output window, operand 0, single buffered']
    %9 = vsyncpa [#allocation3], 0
    %10 = vsyncpa [#allocation6], 0
    %11 = vsyncpa [#allocation4], 0
    loop: start=0, step=1, limit=4
    $region2: #{tpu_custom_call.1} parent=1 // loop_pre_header
      _
    $region3: #{tpu_custom_call.1} parent=1 // loop_header
      %s13 = sphi 0, %s17
      %p14 = scmp.ge.s32.totalorder %s13, 4
      %s21 = sphi 0, %s21
      %s23 = sphi 0, %s21
      %s24 = sphi 0, %s23
      %s38 = sphi 0, %s24
      %s42 = sphi 0, %s42
      %s44 = sphi 0, %s42
      %s45 = sphi 0, %s44
      %s59 = sphi 0, %s45
      %s65 = sphi 0, %s67
      %s68 = sphi 0, %s65
      %s69 = sphi 0, %s68
      %s85 = sphi 0, %s69
      %s91 = sphi 0, %s93
      %s94 = sphi 0, %s91
      %s95 = sphi 0, %s94
      %s111 = sphi 0, %s95
      %s115 = sphi 0, %s115
      %s117 = sphi 0, %s115
      %s118 = sphi 0, %s117
      %s132 = sphi 0, %s118
    $region4: #{tpu_custom_call.1} parent=1 // loop_header_branch
      %16 = sbr.rel (%p14) target = $region8
    $region5: #{tpu_custom_call.1} parent=1 // loop_body
      %s18 = ssub.s32 %s13, 1
      %s19 = ssub.s32 %s13, 2
      %s20 = sadd.s32 %s13, 1
      %s22 = sadd.s32 %s21, 1
      %p25 = scmp.eq.s32.totalorder %s13, 1
      %p26 = scmp.ne.s32.totalorder %s21, %s23
      %p27 = scmp.eq.s32.totalorder %s13, 0
      %p28 = por %p26, %p27
      %p29 = scmp.ne.s32.totalorder %s21, %s23
      %p30 = scmp.eq.s32.totalorder %s18, 1
      %p31 = por %p29, %p30
      %p32 = scmp.ne.s32.totalorder %s23, %s24
      %p33 = scmp.eq.s32.totalorder %s18, 0
      %p34 = por %p32, %p33
      %p35 = scmp.ne.s32.totalorder %s23, %s24
      %p36 = scmp.eq.s32.totalorder %s19, 1
      %p37 = por %p35, %p36
      %p39 = scmp.ne.s32.totalorder %s24, %s38
      %p40 = scmp.eq.s32.totalorder %s19, 0
      %p41 = por %p39, %p40
      %s43 = sadd.s32 %s42, 1
      %p46 = scmp.eq.s32.totalorder %s13, 1
      %p47 = scmp.ne.s32.totalorder %s42, %s44
      %p48 = scmp.eq.s32.totalorder %s13, 0
      %p49 = por %p47, %p48
      %p50 = scmp.ne.s32.totalorder %s42, %s44
      %p51 = scmp.eq.s32.totalorder %s18, 1
      %p52 = por %p50, %p51
      %p53 = scmp.ne.s32.totalorder %s44, %s45
      %p54 = scmp.eq.s32.totalorder %s18, 0
      %p55 = por %p53, %p54
      %p56 = scmp.ne.s32.totalorder %s44, %s45
      %p57 = scmp.eq.s32.totalorder %s19, 1
      %p58 = por %p56, %p57
      %p60 = scmp.ne.s32.totalorder %s45, %s59
      %p61 = scmp.eq.s32.totalorder %s19, 0
      %p62 = por %p60, %p61
      %s63 = ssub.s32 %s13, %s20
      %p64 = scmp.eq.s32.totalorder %s63, 0
      %s66 = sadd.s32 %s65, 1
      %s67 = scalar_select %p64, %s65, %s66
      %p70 = pneg %p64
      %p71 = scmp.eq.s32.totalorder %s13, 1
      %p72 = por %p70, %p71
      %p73 = scmp.ne.s32.totalorder %s65, %s68
      %p74 = scmp.eq.s32.totalorder %s13, 0
      %p75 = por %p73, %p74
      %p76 = scmp.ne.s32.totalorder %s65, %s68
      %p77 = scmp.eq.s32.totalorder %s18, 1
      %p78 = por %p76, %p77
      %p79 = scmp.ne.s32.totalorder %s68, %s69
      %p80 = scmp.eq.s32.totalorder %s18, 0
      %p81 = por %p79, %p80
      %p82 = scmp.ne.s32.totalorder %s68, %s69
      %p83 = scmp.eq.s32.totalorder %s19, 1
      %p84 = por %p82, %p83
      %p86 = scmp.ne.s32.totalorder %s69, %s85
      %p87 = scmp.eq.s32.totalorder %s19, 0
      %p88 = por %p86, %p87
      %s89 = ssub.s32 %s13, %s20
      %p90 = scmp.eq.s32.totalorder %s89, 0
      %s92 = sadd.s32 %s91, 1
      %s93 = scalar_select %p90, %s91, %s92
      %p96 = pneg %p90
      %p97 = scmp.eq.s32.totalorder %s13, 1
      %p98 = por %p96, %p97
      %p99 = scmp.ne.s32.totalorder %s91, %s94
      %p100 = scmp.eq.s32.totalorder %s13, 0
      %p101 = por %p99, %p100
      %p102 = scmp.ne.s32.totalorder %s91, %s94
      %p103 = scmp.eq.s32.totalorder %s18, 1
      %p104 = por %p102, %p103
      %p105 = scmp.ne.s32.totalorder %s94, %s95
      %p106 = scmp.eq.s32.totalorder %s18, 0
      %p107 = por %p105, %p106
      %p108 = scmp.ne.s32.totalorder %s94, %s95
      %p109 = scmp.eq.s32.totalorder %s19, 1
      %p110 = por %p108, %p109
      %p112 = scmp.ne.s32.totalorder %s95, %s111
      %p113 = scmp.eq.s32.totalorder %s19, 0
      %p114 = por %p112, %p113
      %s116 = sadd.s32 %s115, 1
      %p119 = scmp.eq.s32.totalorder %s13, 1
      %p120 = scmp.ne.s32.totalorder %s115, %s117
      %p121 = scmp.eq.s32.totalorder %s13, 0
      %p122 = por %p120, %p121
      %p123 = scmp.ne.s32.totalorder %s115, %s117
      %p124 = scmp.eq.s32.totalorder %s18, 1
      %p125 = por %p123, %p124
      %p126 = scmp.ne.s32.totalorder %s117, %s118
      %p127 = scmp.eq.s32.totalorder %s18, 0
      %p128 = por %p126, %p127
      %p129 = scmp.ne.s32.totalorder %s117, %s118
      %p130 = scmp.eq.s32.totalorder %s19, 1
      %p131 = por %p129, %p130
      %p133 = scmp.ne.s32.totalorder %s118, %s132
      %p134 = scmp.eq.s32.totalorder %s19, 0
      %p135 = por %p133, %p134
      %p136 = scmp.le.s32.totalorder 1, %s13
      %p137 = scmp.lt.s32.totalorder %s13, 3
      %p138 = pnand %p136, %p137
      %p139 = pneg %p138
      // Predicated region
      $region9: #{tpu_custom_call.1} parent=5 // pred_check
        _
      $region10: #{tpu_custom_call.1} parent=5 // pred_check_branch
        %141 = sbr.rel (%p138) target = $region12
      $region11: #{tpu_custom_call.1} parent=5 // pred_region
        %s142 = ssub.s32 %s13, 1
        // Predicated region
        $region13: #{tpu_custom_call.1} parent=11 // pred_check
          %p143 = pneg %p34
        $region14: #{tpu_custom_call.1} parent=11 // pred_check_branch
          %145 = sbr.rel (%p143) target = $region16
        $region15: #{tpu_custom_call.1} parent=11 // pred_region
          %s147 = ssub.s32 2048, 2048
          %148 = vsyncadd [#allocation3], %s147
          %s149 = sshll.u32 [#allocation2], 4
          %s150 = int_to_ptr.vmem [resolvable:$true] %s149
          %155 = dma.hbm_to_vmem [thread:$0]  %s0, 2048, %s150, [#allocation3], 128, 128, 8
        $region16: #{tpu_custom_call.1} parent=11 // pred_fallthru
          _
        // Predicated region
        $region17: #{tpu_custom_call.1} parent=11 // pred_check
          %p156 = pneg %p55
        $region18: #{tpu_custom_call.1} parent=11 // pred_check_branch
          %158 = sbr.rel (%p156) target = $region20
        $region19: #{tpu_custom_call.1} parent=11 // pred_region
          %s160 = ssub.s32 2048, 2048
          %161 = vsyncadd [#allocation6], %s160
          %s162 = sshll.u32 [#allocation5], 4
          %s163 = int_to_ptr.vmem [resolvable:$true] %s162
          %168 = dma.hbm_to_vmem [thread:$0]  %s1, 2048, %s163, [#allocation6], 128, 128, 8
        $region20: #{tpu_custom_call.1} parent=11 // pred_fallthru
          _
      $region12: #{tpu_custom_call.1} parent=5 // pred_fallthru
        _
      %p169 = scmp.lt.s32.totalorder %s13, 2
      // Predicated region
      $region21: #{tpu_custom_call.1} parent=5 // pred_check
        %p170 = pneg %p169
      $region22: #{tpu_custom_call.1} parent=5 // pred_check_branch
        %172 = sbr.rel (%p170) target = $region24
      $region23: #{tpu_custom_call.1} parent=5 // pred_region
        // Predicated region
        $region25: #{tpu_custom_call.1} parent=23 // pred_check
          %p173 = pneg %p75
        $region26: #{tpu_custom_call.1} parent=23 // pred_check_branch
          %175 = sbr.rel (%p173) target = $region28
        $region27: #{tpu_custom_call.1} parent=23 // pred_region
          %s176 = sand.u32 %s13, 1
          %s177 = scalar_lea.sflag [#allocation3], %s176
          %s178 = sand.u32 %s65, 1
          %s179 = smul.addr %s178, 128
          %s180 = scalar_lea.vmem [#allocation7], %s179
          %s182 = ssub.s32 2048, 2048
          %183 = vsyncadd %s177, %s182
          %s184 = smul.addr %s13, 16
          %s185 = smul.addr %s184, 128
          %s186 = scalar_lea.hbm %s2, %s185
          %s187 = sshll.u32 %s180, 4
          %s188 = int_to_ptr.vmem [resolvable:$true] %s187
          %193 = dma.hbm_to_vmem [thread:$0]  %s186, 2048, %s188, %s177, 128, 128, 8
        $region28: #{tpu_custom_call.1} parent=23 // pred_fallthru
          _
        // Predicated region
        $region29: #{tpu_custom_call.1} parent=23 // pred_check
          %p194 = pneg %p101
        $region30: #{tpu_custom_call.1} parent=23 // pred_check_branch
          %196 = sbr.rel (%p194) target = $region32
        $region31: #{tpu_custom_call.1} parent=23 // pred_region
          %p197 = scmp.lt.s32.totalorder %s13, 1
          %s198 = scalar_select %p197, %s13, 1
          %s199 = scalar_lea.vmem %s3, %s198
        $region32: #{tpu_custom_call.1} parent=23 // pred_fallthru
          _
      $region24: #{tpu_custom_call.1} parent=5 // pred_fallthru
        _
      %p200 = scmp.le.s32.totalorder 1, %s13
      %p201 = scmp.lt.s32.totalorder %s13, 3
      %p202 = pnand %p200, %p201
      %p203 = pneg %p202
      // Predicated region
      $region33: #{tpu_custom_call.1} parent=5 // pred_check
        _
      $region34: #{tpu_custom_call.1} parent=5 // pred_check_branch
        %205 = sbr.rel (%p202) target = $region36
      $region35: #{tpu_custom_call.1} parent=5 // pred_region
        %s206 = ssub.s32 %s13, 1
        // Predicated region
        $region37: #{tpu_custom_call.1} parent=35 // pred_check
          %p207 = pneg %p34
        $region38: #{tpu_custom_call.1} parent=35 // pred_check_branch
          %209 = sbr.rel (%p207) target = $region40
        $region39: #{tpu_custom_call.1} parent=35 // pred_region
          %210 = dma.done [#allocation3], 2048
        $region40: #{tpu_custom_call.1} parent=35 // pred_fallthru
          _
        // Predicated region
        $region41: #{tpu_custom_call.1} parent=35 // pred_check
          %p211 = pneg %p55
        $region42: #{tpu_custom_call.1} parent=35 // pred_check_branch
          %213 = sbr.rel (%p211) target = $region44
        $region43: #{tpu_custom_call.1} parent=35 // pred_region
          %214 = dma.done [#allocation6], 2048
        $region44: #{tpu_custom_call.1} parent=35 // pred_fallthru
          _
        %s215 = sand.u32 %s18, 1
        %s216 = scalar_lea.sflag [#allocation3], %s215
        %s217 = sand.u32 %s68, 1
        %s218 = smul.addr %s217, 128
        %s219 = scalar_lea.vmem [#allocation7], %s218
        // Predicated region
        $region45: #{tpu_custom_call.1} parent=35 // pred_check
          %p220 = pneg %p81
        $region46: #{tpu_custom_call.1} parent=35 // pred_check_branch
          %222 = sbr.rel (%p220) target = $region48
        $region47: #{tpu_custom_call.1} parent=35 // pred_region
          %223 = dma.done %s216, 2048
        $region48: #{tpu_custom_call.1} parent=35 // pred_fallthru
          _
        %p224 = pneg %p34
        %p225 = pneg %p31
        %p226 = pneg %p55
        %p227 = pneg %p52
        %s228 = sand.u32 %s18, 1
        %s229 = scalar_lea.sflag [#allocation3], %s228
        %s230 = sand.u32 %s68, 1
        %s231 = smul.addr %s230, 128
        %s232 = scalar_lea.vmem [#allocation7], %s231
        %p233 = pneg %p81
        %p234 = pneg %p78
        %p235 = scmp.lt.s32.totalorder %s18, 1
        %s236 = scalar_select %p235, %s18, 1
        %s237 = scalar_lea.vmem %s3, %s236
        %p238 = pneg %p107
        %p239 = pneg %p104
        %p240 = pneg %p128
        %p241 = pneg %p125
        %p242 = scmp.lt.s32.totalorder %s18, 1
        %s243 = scalar_select %p242, %s18, 1
        %s244 = scalar_lea.vmem %s3, %s243
        %p245 = scmp.eq.s32.totalorder %s18, 0
        // Predicated region
        $region49: #{tpu_custom_call.1} parent=35 // pred_check
          %p246 = pneg %p245
        $region50: #{tpu_custom_call.1} parent=35 // pred_check_branch
          %248 = sbr.rel (%p246) target = $region52
        $region51: #{tpu_custom_call.1} parent=35 // pred_region
          %v249 = vld [vmem:[#allocation5] sm:$0xff]
          %v250 = vld [vmem:[#allocation5 + $0x8] sm:$0xff]
          %v251 = vld [vmem:[#allocation5 + $0x10] sm:$0xff]
          %v252 = vld [vmem:[#allocation5 + $0x18] sm:$0xff]
          %v253 = vld [vmem:[#allocation5 + $0x20] sm:$0xff]
          %v254 = vld [vmem:[#allocation5 + $0x28] sm:$0xff]
          %v255 = vld [vmem:[#allocation5 + $0x30] sm:$0xff]
          %v256 = vld [vmem:[#allocation5 + $0x38] sm:$0xff]
          %v257 = vld [vmem:[#allocation5 + $0x40] sm:$0xff]
          %v258 = vld [vmem:[#allocation5 + $0x48] sm:$0xff]
          %v259 = vld [vmem:[#allocation5 + $0x50] sm:$0xff]
          %v260 = vld [vmem:[#allocation5 + $0x58] sm:$0xff]
          %v261 = vld [vmem:[#allocation5 + $0x60] sm:$0xff]
          %v262 = vld [vmem:[#allocation5 + $0x68] sm:$0xff]
          %v263 = vld [vmem:[#allocation5 + $0x70] sm:$0xff]
          %v264 = vld [vmem:[#allocation5 + $0x78] sm:$0xff]
          %265 = vst [vmem:[#allocation8] sm:$0xff] %v249
          %266 = vst [vmem:[#allocation8 + $0x8] sm:$0xff] %v250
          %267 = vst [vmem:[#allocation8 + $0x10] sm:$0xff] %v251
          %268 = vst [vmem:[#allocation8 + $0x18] sm:$0xff] %v252
          %269 = vst [vmem:[#allocation8 + $0x20] sm:$0xff] %v253
          %270 = vst [vmem:[#allocation8 + $0x28] sm:$0xff] %v254
          %271 = vst [vmem:[#allocation8 + $0x30] sm:$0xff] %v255
          %272 = vst [vmem:[#allocation8 + $0x38] sm:$0xff] %v256
          %273 = vst [vmem:[#allocation8 + $0x40] sm:$0xff] %v257
          %274 = vst [vmem:[#allocation8 + $0x48] sm:$0xff] %v258
          %275 = vst [vmem:[#allocation8 + $0x50] sm:$0xff] %v259
          %276 = vst [vmem:[#allocation8 + $0x58] sm:$0xff] %v260
          %277 = vst [vmem:[#allocation8 + $0x60] sm:$0xff] %v261
          %278 = vst [vmem:[#allocation8 + $0x68] sm:$0xff] %v262
          %279 = vst [vmem:[#allocation8 + $0x70] sm:$0xff] %v263
          %280 = vst [vmem:[#allocation8 + $0x78] sm:$0xff] %v264
        $region52: #{tpu_custom_call.1} parent=35 // pred_fallthru
          _
        %v281 = vld [vmem:[#allocation8] sm:$0xff]
        %v282 = vld [vmem:[#allocation8 + $0x8] sm:$0xff]
        %v283 = vld [vmem:[#allocation8 + $0x10] sm:$0xff]
        %v284 = vld [vmem:[#allocation8 + $0x18] sm:$0xff]
        %v285 = vld [vmem:[#allocation8 + $0x20] sm:$0xff]
        %v286 = vld [vmem:[#allocation8 + $0x28] sm:$0xff]
        %v287 = vld [vmem:[#allocation8 + $0x30] sm:$0xff]
        %v288 = vld [vmem:[#allocation8 + $0x38] sm:$0xff]
        %v289 = vld [vmem:[#allocation8 + $0x40] sm:$0xff]
        %v290 = vld [vmem:[#allocation8 + $0x48] sm:$0xff]
        %v291 = vld [vmem:[#allocation8 + $0x50] sm:$0xff]
        %v292 = vld [vmem:[#allocation8 + $0x58] sm:$0xff]
        %v293 = vld [vmem:[#allocation8 + $0x60] sm:$0xff]
        %v294 = vld [vmem:[#allocation8 + $0x68] sm:$0xff]
        %v295 = vld [vmem:[#allocation8 + $0x70] sm:$0xff]
        %v296 = vld [vmem:[#allocation8 + $0x78] sm:$0xff]
        %v297 = vld [vmem:[#allocation2] sm:$0xff]
        %v298 = vld [vmem:[#allocation2 + $0x8] sm:$0xff]
        %v299 = vld [vmem:[#allocation2 + $0x10] sm:$0xff]
        %v300 = vld [vmem:[#allocation2 + $0x18] sm:$0xff]
        %v301 = vld [vmem:[#allocation2 + $0x20] sm:$0xff]
        %v302 = vld [vmem:[#allocation2 + $0x28] sm:$0xff]
        %v303 = vld [vmem:[#allocation2 + $0x30] sm:$0xff]
        %v304 = vld [vmem:[#allocation2 + $0x38] sm:$0xff]
        %v305 = vld [vmem:[#allocation2 + $0x40] sm:$0xff]
        %v306 = vld [vmem:[#allocation2 + $0x48] sm:$0xff]
        %v307 = vld [vmem:[#allocation2 + $0x50] sm:$0xff]
        %v308 = vld [vmem:[#allocation2 + $0x58] sm:$0xff]
        %v309 = vld [vmem:[#allocation2 + $0x60] sm:$0xff]
        %v310 = vld [vmem:[#allocation2 + $0x68] sm:$0xff]
        %v311 = vld [vmem:[#allocation2 + $0x70] sm:$0xff]
        %v312 = vld [vmem:[#allocation2 + $0x78] sm:$0xff]
        %313 = vmatprep.subr.mxu0 0.0
        %314 = vmatpush1.msra.mxu0 %v281
        %315 = vmatprep.subr.mxu0 0.0
        %316 = vmatpush1.msra.mxu0 %v282
        %317 = vmatprep.subr.mxu0 0.0
        %318 = vmatpush1.msra.mxu0 %v283
        %319 = vmatprep.subr.mxu0 0.0
        %320 = vmatpush1.msra.mxu0 %v284
        %321 = vmatprep.subr.mxu0 0.0
        %322 = vmatpush1.msra.mxu0 %v285
        %323 = vmatprep.subr.mxu0 0.0
        %324 = vmatpush1.msra.mxu0 %v286
        %325 = vmatprep.subr.mxu0 0.0
        %326 = vmatpush1.msra.mxu0 %v287
        %327 = vmatprep.subr.mxu0 0.0
        %328 = vmatpush1.msra.mxu0 %v288
        %329 = vmatprep.subr.mxu0 0.0
        %330 = vmatpush1.msra.mxu0 %v289
        %331 = vmatprep.subr.mxu0 0.0
        %332 = vmatpush1.msra.mxu0 %v290
        %333 = vmatprep.subr.mxu0 0.0
        %334 = vmatpush1.msra.mxu0 %v291
        %335 = vmatprep.subr.mxu0 0.0
        %336 = vmatpush1.msra.mxu0 %v292
        %337 = vmatprep.subr.mxu0 0.0
        %338 = vmatpush1.msra.mxu0 %v293
        %339 = vmatprep.subr.mxu0 0.0
        %340 = vmatpush1.msra.mxu0 %v294
        %341 = vmatprep.subr.mxu0 0.0
        %342 = vmatpush1.msra.mxu0 %v295
        %343 = vmatprep.subr.mxu0 0.0
        %344 = vmatpush1.msra.mxu0 %v296
        %345 = vmatprep.subr.mxu0 0.0
        %346 = vmatpush1.msra.mxu0 0.0
        %347 = vmatprep.subr.mxu0 0.0
        %348 = vmatpush1.msra.mxu0 0.0
        %349 = vmatprep.subr.mxu0 0.0
        %350 = vmatpush1.msra.mxu0 0.0
        %351 = vmatprep.subr.mxu0 0.0
        %352 = vmatpush1.msra.mxu0 0.0
        %353 = vmatprep.subr.mxu0 0.0
        %354 = vmatpush1.msra.mxu0 0.0
        %355 = vmatprep.subr.mxu0 0.0
        %356 = vmatpush1.msra.mxu0 0.0
        %357 = vmatprep.subr.mxu0 0.0
        %358 = vmatpush1.msra.mxu0 0.0
        %359 = vmatprep.subr.mxu0 0.0
        %360 = vmatpush1.msra.mxu0 0.0
        %361 = vmatprep.subr.mxu0 0.0
        %362 = vmatpush1.msra.mxu0 0.0
        %363 = vmatprep.subr.mxu0 0.0
        %364 = vmatpush1.msra.mxu0 0.0
        %365 = vmatprep.subr.mxu0 0.0
        %366 = vmatpush1.msra.mxu0 0.0
        %367 = vmatprep.subr.mxu0 0.0
        %368 = vmatpush1.msra.mxu0 0.0
        %369 = vmatprep.subr.mxu0 0.0
        %370 = vmatpush1.msra.mxu0 0.0
        %371 = vmatprep.subr.mxu0 0.0
        %372 = vmatpush1.msra.mxu0 0.0
        %373 = vmatprep.subr.mxu0 0.0
        %374 = vmatpush1.msra.mxu0 0.0
        %375 = vmatprep.subr.mxu0 0.0
        %376 = vmatpush1.msra.mxu0 0.0
        %377 = vmatprep.mubr.f32.mxu0 0.0
        %378 = vmatmul.mubr.f32.gmra.mrb[0].mxu0 %v297
        %v379 = vpop.f32.mrb[0].mxu0
        %v380 = vadd.f32 0.0, %v379
        %v381 = vpop.f32.mrb[0].mxu0
        %382 = vmatprep.mubr.f32.mxu0 0.0
        %383 = vmatmul.mubr.f32.gmra.mrb[0].mxu0 %v298
        %v384 = vpop.f32.mrb[0].mxu0
        %v385 = vadd.f32 0.0, %v384
        %v386 = vpop.f32.mrb[0].mxu0
        %387 = vmatprep.mubr.f32.mxu0 0.0
        %388 = vmatmul.mubr.f32.gmra.mrb[0].mxu0 %v299
        %v389 = vpop.f32.mrb[0].mxu0
        %v390 = vadd.f32 0.0, %v389
        %v391 = vpop.f32.mrb[0].mxu0
        %392 = vmatprep.mubr.f32.mxu0 0.0
        %393 = vmatmul.mubr.f32.gmra.mrb[0].mxu0 %v300
        %v394 = vpop.f32.mrb[0].mxu0
        %v395 = vadd.f32 0.0, %v394
        %v396 = vpop.f32.mrb[0].mxu0
        %397 = vmatprep.mubr.f32.mxu0 0.0
        %398 = vmatmul.mubr.f32.gmra.mrb[0].mxu0 %v301
        %v399 = vpop.f32.mrb[0].mxu0
        %v400 = vadd.f32 0.0, %v399
        %v401 = vpop.f32.mrb[0].mxu0
        %402 = vmatprep.mubr.f32.mxu0 0.0
        %403 = vmatmul.mubr.f32.gmra.mrb[0].mxu0 %v302
        %v404 = vpop.f32.mrb[0].mxu0
        %v405 = vadd.f32 0.0, %v404
        %v406 = vpop.f32.mrb[0].mxu0
        %407 = vmatprep.mubr.f32.mxu0 0.0
        %408 = vmatmul.mubr.f32.gmra.mrb[0].mxu0 %v303
        %v409 = vpop.f32.mrb[0].mxu0
        %v410 = vadd.f32 0.0, %v409
        %v411 = vpop.f32.mrb[0].mxu0
        %412 = vmatprep.mubr.f32.mxu0 0.0
        %413 = vmatmul.mubr.f32.gmra.mrb[0].mxu0 %v304
        %v414 = vpop.f32.mrb[0].mxu0
        %v415 = vadd.f32 0.0, %v414
        %v416 = vpop.f32.mrb[0].mxu0
        %417 = vmatprep.mubr.f32.mxu0 0.0
        %418 = vmatmul.mubr.f32.gmra.mrb[0].mxu0 %v305
        %v419 = vpop.f32.mrb[0].mxu0
        %v420 = vadd.f32 0.0, %v419
        %v421 = vpop.f32.mrb[0].mxu0
        %422 = vmatprep.mubr.f32.mxu0 0.0
        %423 = vmatmul.mubr.f32.gmra.mrb[0].mxu0 %v306
        %v424 = vpop.f32.mrb[0].mxu0
        %v425 = vadd.f32 0.0, %v424
        %v426 = vpop.f32.mrb[0].mxu0
        %427 = vmatprep.mubr.f32.mxu0 0.0
        %428 = vmatmul.mubr.f32.gmra.mrb[0].mxu0 %v307
        %v429 = vpop.f32.mrb[0].mxu0
        %v430 = vadd.f32 0.0, %v429
        %v431 = vpop.f32.mrb[0].mxu0
        %432 = vmatprep.mubr.f32.mxu0 0.0
        %433 = vmatmul.mubr.f32.gmra.mrb[0].mxu0 %v308
        %v434 = vpop.f32.mrb[0].mxu0
        %v435 = vadd.f32 0.0, %v434
        %v436 = vpop.f32.mrb[0].mxu0
        %437 = vmatprep.mubr.f32.mxu0 0.0
        %438 = vmatmul.mubr.f32.gmra.mrb[0].mxu0 %v309
        %v439 = vpop.f32.mrb[0].mxu0
        %v440 = vadd.f32 0.0, %v439
        %v441 = vpop.f32.mrb[0].mxu0
        %442 = vmatprep.mubr.f32.mxu0 0.0
        %443 = vmatmul.mubr.f32.gmra.mrb[0].mxu0 %v310
        %v444 = vpop.f32.mrb[0].mxu0
        %v445 = vadd.f32 0.0, %v444
        %v446 = vpop.f32.mrb[0].mxu0
        %447 = vmatprep.mubr.f32.mxu0 0.0
        %448 = vmatmul.mubr.f32.gmra.mrb[0].mxu0 %v311
        %v449 = vpop.f32.mrb[0].mxu0
        %v450 = vadd.f32 0.0, %v449
        %v451 = vpop.f32.mrb[0].mxu0
        %452 = vmatprep.mubr.f32.mxu0 0.0
        %453 = vmatmul.mubr.f32.gmra.mrb[0].mxu0 %v312
        %v454 = vpop.f32.mrb[0].mxu0
        %v455 = vadd.f32 0.0, %v454
        %v456 = vpop.f32.mrb[0].mxu0
        %457 = vdwg.mxu0
        %v458 = vld [vmem:[%s219] sm:$0xff]
        %v459 = vld [vmem:[%s219 + $0x8] sm:$0xff]
        %v460 = vld [vmem:[%s219 + $0x10] sm:$0xff]
        %v461 = vld [vmem:[%s219 + $0x18] sm:$0xff]
        %v462 = vld [vmem:[%s219 + $0x20] sm:$0xff]
        %v463 = vld [vmem:[%s219 + $0x28] sm:$0xff]
        %v464 = vld [vmem:[%s219 + $0x30] sm:$0xff]
        %v465 = vld [vmem:[%s219 + $0x38] sm:$0xff]
        %v466 = vld [vmem:[%s219 + $0x40] sm:$0xff]
        %v467 = vld [vmem:[%s219 + $0x48] sm:$0xff]
        %v468 = vld [vmem:[%s219 + $0x50] sm:$0xff]
        %v469 = vld [vmem:[%s219 + $0x58] sm:$0xff]
        %v470 = vld [vmem:[%s219 + $0x60] sm:$0xff]
        %v471 = vld [vmem:[%s219 + $0x68] sm:$0xff]
        %v472 = vld [vmem:[%s219 + $0x70] sm:$0xff]
        %v473 = vld [vmem:[%s219 + $0x78] sm:$0xff]
        %v474 = vld [vmem:[%s244] sm:$0x1]
        %v476 = vlaneseq
        %v477 = vshrl.u32 %v476, 7
        %v478 = vsub.s32 0, %v477
        %v479 = vrot.slane %v474, %v478
        %481 = vmatprep.subr.mxu0 0.0
        %482 = vmatpush1.msra.mxu0 %v458
        %483 = vmatprep.subr.mxu0 0.0
        %484 = vmatpush1.msra.mxu0 %v459
        %485 = vmatprep.subr.mxu0 0.0
        %486 = vmatpush1.msra.mxu0 %v460
        %487 = vmatprep.subr.mxu0 0.0
        %488 = vmatpush1.msra.mxu0 %v461
        %489 = vmatprep.subr.mxu0 0.0
        %490 = vmatpush1.msra.mxu0 %v462
        %491 = vmatprep.subr.mxu0 0.0
        %492 = vmatpush1.msra.mxu0 %v463
        %493 = vmatprep.subr.mxu0 0.0
        %494 = vmatpush1.msra.mxu0 %v464
        %495 = vmatprep.subr.mxu0 0.0
        %496 = vmatpush1.msra.mxu0 %v465
        %497 = vmatprep.subr.mxu0 0.0
        %498 = vmatpush1.msra.mxu0 %v466
        %499 = vmatprep.subr.mxu0 0.0
        %500 = vmatpush1.msra.mxu0 %v467
        %501 = vmatprep.subr.mxu0 0.0
        %502 = vmatpush1.msra.mxu0 %v468
        %503 = vmatprep.subr.mxu0 0.0
        %504 = vmatpush1.msra.mxu0 %v469
        %505 = vmatprep.subr.mxu0 0.0
        %506 = vmatpush1.msra.mxu0 %v470
        %507 = vmatprep.subr.mxu0 0.0
        %508 = vmatpush1.msra.mxu0 %v471
        %509 = vmatprep.subr.mxu0 0.0
        %510 = vmatpush1.msra.mxu0 %v472
        %511 = vmatprep.subr.mxu0 0.0
        %512 = vmatpush1.msra.mxu0 %v473
        %513 = vmatprep.subr.mxu0 0.0
        %514 = vmatpush1.msra.mxu0 0.0
        %515 = vmatprep.subr.mxu0 0.0
        %516 = vmatpush1.msra.mxu0 0.0
        %517 = vmatprep.subr.mxu0 0.0
        %518 = vmatpush1.msra.mxu0 0.0
        %519 = vmatprep.subr.mxu0 0.0
        %520 = vmatpush1.msra.mxu0 0.0
        %521 = vmatprep.subr.mxu0 0.0
        %522 = vmatpush1.msra.mxu0 0.0
        %523 = vmatprep.subr.mxu0 0.0
        %524 = vmatpush1.msra.mxu0 0.0
        %525 = vmatprep.subr.mxu0 0.0
        %526 = vmatpush1.msra.mxu0 0.0
        %527 = vmatprep.subr.mxu0 0.0
        %528 = vmatpush1.msra.mxu0 0.0
        %529 = vmatprep.subr.mxu0 0.0
        %530 = vmatpush1.msra.mxu0 0.0
        %531 = vmatprep.subr.mxu0 0.0
        %532 = vmatpush1.msra.mxu0 0.0
        %533 = vmatprep.subr.mxu0 0.0
        %534 = vmatpush1.msra.mxu0 0.0
        %535 = vmatprep.subr.mxu0 0.0
        %536 = vmatpush1.msra.mxu0 0.0
        %537 = vmatprep.subr.mxu0 0.0
        %538 = vmatpush1.msra.mxu0 0.0
        %539 = vmatprep.subr.mxu0 0.0
        %540 = vmatpush1.msra.mxu0 0.0
        %541 = vmatprep.subr.mxu0 0.0
        %542 = vmatpush1.msra.mxu0 0.0
        %543 = vmatprep.subr.mxu0 0.0
        %544 = vmatpush1.msra.mxu0 0.0
        %545 = vmatprep.mubr.f32.mxu0 0.0
        %546 = vmatmul.mubr.f32.gmra.mrb[0].mxu0 %v380
        %v547 = vpop.f32.mrb[0].mxu0
        %v548 = vadd.f32 %v479, %v547
        %v549 = vpop.f32.mrb[0].mxu0
        %550 = vmatprep.mubr.f32.mxu0 0.0
        %551 = vmatmul.mubr.f32.gmra.mrb[0].mxu0 %v385
        %v552 = vpop.f32.mrb[0].mxu0
        %v553 = vadd.f32 %v479, %v552
        %v554 = vpop.f32.mrb[0].mxu0
        %555 = vmatprep.mubr.f32.mxu0 0.0
        %556 = vmatmul.mubr.f32.gmra.mrb[0].mxu0 %v390
        %v557 = vpop.f32.mrb[0].mxu0
        %v558 = vadd.f32 %v479, %v557
        %v559 = vpop.f32.mrb[0].mxu0
        %560 = vmatprep.mubr.f32.mxu0 0.0
        %561 = vmatmul.mubr.f32.gmra.mrb[0].mxu0 %v395
        %v562 = vpop.f32.mrb[0].mxu0
        %v563 = vadd.f32 %v479, %v562
        %v564 = vpop.f32.mrb[0].mxu0
        %565 = vmatprep.mubr.f32.mxu0 0.0
        %566 = vmatmul.mubr.f32.gmra.mrb[0].mxu0 %v400
        %v567 = vpop.f32.mrb[0].mxu0
        %v568 = vadd.f32 %v479, %v567
        %v569 = vpop.f32.mrb[0].mxu0
        %570 = vmatprep.mubr.f32.mxu0 0.0
        %571 = vmatmul.mubr.f32.gmra.mrb[0].mxu0 %v405
        %v572 = vpop.f32.mrb[0].mxu0
        %v573 = vadd.f32 %v479, %v572
        %v574 = vpop.f32.mrb[0].mxu0
        %575 = vmatprep.mubr.f32.mxu0 0.0
        %576 = vmatmul.mubr.f32.gmra.mrb[0].mxu0 %v410
        %v577 = vpop.f32.mrb[0].mxu0
        %v578 = vadd.f32 %v479, %v577
        %v579 = vpop.f32.mrb[0].mxu0
        %580 = vmatprep.mubr.f32.mxu0 0.0
        %581 = vmatmul.mubr.f32.gmra.mrb[0].mxu0 %v415
        %v582 = vpop.f32.mrb[0].mxu0
        %v583 = vadd.f32 %v479, %v582
        %v584 = vpop.f32.mrb[0].mxu0
        %585 = vmatprep.mubr.f32.mxu0 0.0
        %586 = vmatmul.mubr.f32.gmra.mrb[0].mxu0 %v420
        %v587 = vpop.f32.mrb[0].mxu0
        %v588 = vadd.f32 %v479, %v587
        %v589 = vpop.f32.mrb[0].mxu0
        %590 = vmatprep.mubr.f32.mxu0 0.0
        %591 = vmatmul.mubr.f32.gmra.mrb[0].mxu0 %v425
        %v592 = vpop.f32.mrb[0].mxu0
        %v593 = vadd.f32 %v479, %v592
        %v594 = vpop.f32.mrb[0].mxu0
        %595 = vmatprep.mubr.f32.mxu0 0.0
        %596 = vmatmul.mubr.f32.gmra.mrb[0].mxu0 %v430
        %v597 = vpop.f32.mrb[0].mxu0
        %v598 = vadd.f32 %v479, %v597
        %v599 = vpop.f32.mrb[0].mxu0
        %600 = vmatprep.mubr.f32.mxu0 0.0
        %601 = vmatmul.mubr.f32.gmra.mrb[0].mxu0 %v435
        %v602 = vpop.f32.mrb[0].mxu0
        %v603 = vadd.f32 %v479, %v602
        %v604 = vpop.f32.mrb[0].mxu0
        %605 = vmatprep.mubr.f32.mxu0 0.0
        %606 = vmatmul.mubr.f32.gmra.mrb[0].mxu0 %v440
        %v607 = vpop.f32.mrb[0].mxu0
        %v608 = vadd.f32 %v479, %v607
        %v609 = vpop.f32.mrb[0].mxu0
        %610 = vmatprep.mubr.f32.mxu0 0.0
        %611 = vmatmul.mubr.f32.gmra.mrb[0].mxu0 %v445
        %v612 = vpop.f32.mrb[0].mxu0
        %v613 = vadd.f32 %v479, %v612
        %v614 = vpop.f32.mrb[0].mxu0
        %615 = vmatprep.mubr.f32.mxu0 0.0
        %616 = vmatmul.mubr.f32.gmra.mrb[0].mxu0 %v450
        %v617 = vpop.f32.mrb[0].mxu0
        %v618 = vadd.f32 %v479, %v617
        %v619 = vpop.f32.mrb[0].mxu0
        %620 = vmatprep.mubr.f32.mxu0 0.0
        %621 = vmatmul.mubr.f32.gmra.mrb[0].mxu0 %v455
        %v622 = vpop.f32.mrb[0].mxu0
        %v623 = vadd.f32 %v479, %v622
        %v624 = vpop.f32.mrb[0].mxu0
        %625 = vdwg.mxu0
        %vm626 = vcmp.ge.f32.partialorder %v548, 0.0
        %vm627 = vcmp.ge.f32.partialorder %v553, 0.0
        %vm628 = vcmp.ge.f32.partialorder %v558, 0.0
        %vm629 = vcmp.ge.f32.partialorder %v563, 0.0
        %vm630 = vcmp.ge.f32.partialorder %v568, 0.0
        %vm631 = vcmp.ge.f32.partialorder %v573, 0.0
        %vm632 = vcmp.ge.f32.partialorder %v578, 0.0
        %vm633 = vcmp.ge.f32.partialorder %v583, 0.0
        %vm634 = vcmp.ge.f32.partialorder %v588, 0.0
        %vm635 = vcmp.ge.f32.partialorder %v593, 0.0
        %vm636 = vcmp.ge.f32.partialorder %v598, 0.0
        %vm637 = vcmp.ge.f32.partialorder %v603, 0.0
        %vm638 = vcmp.ge.f32.partialorder %v608, 0.0
        %vm639 = vcmp.ge.f32.partialorder %v613, 0.0
        %vm640 = vcmp.ge.f32.partialorder %v618, 0.0
        %vm641 = vcmp.ge.f32.partialorder %v623, 0.0
        %v642 = vmul.f32 %v548, 0.01
        %v643 = vmul.f32 %v553, 0.01
        %v644 = vmul.f32 %v558, 0.01
        %v645 = vmul.f32 %v563, 0.01
        %v646 = vmul.f32 %v568, 0.01
        %v647 = vmul.f32 %v573, 0.01
        %v648 = vmul.f32 %v578, 0.01
        %v649 = vmul.f32 %v583, 0.01
        %v650 = vmul.f32 %v588, 0.01
        %v651 = vmul.f32 %v593, 0.01
        %v652 = vmul.f32 %v598, 0.01
        %v653 = vmul.f32 %v603, 0.01
        %v654 = vmul.f32 %v608, 0.01
        %v655 = vmul.f32 %v613, 0.01
        %v656 = vmul.f32 %v618, 0.01
        %v657 = vmul.f32 %v623, 0.01
        %v658 = vsel %vm626, %v548, %v642
        %v659 = vsel %vm627, %v553, %v643
        %v660 = vsel %vm628, %v558, %v644
        %v661 = vsel %vm629, %v563, %v645
        %v662 = vsel %vm630, %v568, %v646
        %v663 = vsel %vm631, %v573, %v647
        %v664 = vsel %vm632, %v578, %v648
        %v665 = vsel %vm633, %v583, %v649
        %v666 = vsel %vm634, %v588, %v650
        %v667 = vsel %vm635, %v593, %v651
        %v668 = vsel %vm636, %v598, %v652
        %v669 = vsel %vm637, %v603, %v653
        %v670 = vsel %vm638, %v608, %v654
        %v671 = vsel %vm639, %v613, %v655
        %v672 = vsel %vm640, %v618, %v656
        %v673 = vsel %vm641, %v623, %v657
        %v674 = vmul.f32 %v658, %v658
        %v675 = vmul.f32 %v659, %v659
        %v676 = vmul.f32 %v660, %v660
        %v677 = vmul.f32 %v661, %v661
        %v678 = vmul.f32 %v662, %v662
        %v679 = vmul.f32 %v663, %v663
        %v680 = vmul.f32 %v664, %v664
        %v681 = vmul.f32 %v665, %v665
        %v682 = vmul.f32 %v666, %v666
        %v683 = vmul.f32 %v667, %v667
        %v684 = vmul.f32 %v668, %v668
        %v685 = vmul.f32 %v669, %v669
        %v686 = vmul.f32 %v670, %v670
        %v687 = vmul.f32 %v671, %v671
        %v688 = vmul.f32 %v672, %v672
        %v689 = vmul.f32 %v673, %v673
        %690 = vadd.xlane.f32.xlu0 %v674
        %v691 = vpop.xlane.xlu0 %690
        %692 = vadd.xlane.f32.xlu0 %v675
        %v693 = vpop.xlane.xlu0 %692
        %694 = vadd.xlane.f32.xlu0 %v676
        %v695 = vpop.xlane.xlu0 %694
        %696 = vadd.xlane.f32.xlu0 %v677
        %v697 = vpop.xlane.xlu0 %696
        %698 = vadd.xlane.f32.xlu0 %v678
        %v699 = vpop.xlane.xlu0 %698
        %700 = vadd.xlane.f32.xlu0 %v679
        %v701 = vpop.xlane.xlu0 %700
        %702 = vadd.xlane.f32.xlu0 %v680
        %v703 = vpop.xlane.xlu0 %702
        %704 = vadd.xlane.f32.xlu0 %v681
        %v705 = vpop.xlane.xlu0 %704
        %706 = vadd.xlane.f32.xlu0 %v682
        %v707 = vpop.xlane.xlu0 %706
        %708 = vadd.xlane.f32.xlu0 %v683
        %v709 = vpop.xlane.xlu0 %708
        %710 = vadd.xlane.f32.xlu0 %v684
        %v711 = vpop.xlane.xlu0 %710
        %712 = vadd.xlane.f32.xlu0 %v685
        %v713 = vpop.xlane.xlu0 %712
        %714 = vadd.xlane.f32.xlu0 %v686
        %v715 = vpop.xlane.xlu0 %714
        %716 = vadd.xlane.f32.xlu0 %v687
        %v717 = vpop.xlane.xlu0 %716
        %718 = vadd.xlane.f32.xlu0 %v688
        %v719 = vpop.xlane.xlu0 %718
        %720 = vadd.xlane.f32.xlu0 %v689
        %v721 = vpop.xlane.xlu0 %720
        %v722 = vmax.f32 %v691, 1e-24
        %v723 = vmax.f32 %v693, 1e-24
        %v724 = vmax.f32 %v695, 1e-24
        %v725 = vmax.f32 %v697, 1e-24
        %v726 = vmax.f32 %v699, 1e-24
        %v727 = vmax.f32 %v701, 1e-24
        %v728 = vmax.f32 %v703, 1e-24
        %v729 = vmax.f32 %v705, 1e-24
        %v730 = vmax.f32 %v707, 1e-24
        %v731 = vmax.f32 %v709, 1e-24
        %v732 = vmax.f32 %v711, 1e-24
        %v733 = vmax.f32 %v713, 1e-24
        %v734 = vmax.f32 %v715, 1e-24
        %v735 = vmax.f32 %v717, 1e-24
        %v736 = vmax.f32 %v719, 1e-24
        %v737 = vmax.f32 %v721, 1e-24
        %v738 = vrsqrt.pop %v722
        %v739 = vrsqrt.pop %v723
        %v740 = vrsqrt.pop %v724
        %v741 = vrsqrt.pop %v725
        %v742 = vrsqrt.pop %v726
        %v743 = vrsqrt.pop %v727
        %v744 = vrsqrt.pop %v728
        %v745 = vrsqrt.pop %v729
        %v746 = vrsqrt.pop %v730
        %v747 = vrsqrt.pop %v731
        %v748 = vrsqrt.pop %v732
        %v749 = vrsqrt.pop %v733
        %v750 = vrsqrt.pop %v734
        %v751 = vrsqrt.pop %v735
        %v752 = vrsqrt.pop %v736
        %v753 = vrsqrt.pop %v737
        %v754 = vmul.f32 %v658, %v738
        %v755 = vmul.f32 %v659, %v739
        %v756 = vmul.f32 %v660, %v740
        %v757 = vmul.f32 %v661, %v741
        %v758 = vmul.f32 %v662, %v742
        %v759 = vmul.f32 %v663, %v743
        %v760 = vmul.f32 %v664, %v744
        %v761 = vmul.f32 %v665, %v745
        %v762 = vmul.f32 %v666, %v746
        %v763 = vmul.f32 %v667, %v747
        %v764 = vmul.f32 %v668, %v748
        %v765 = vmul.f32 %v669, %v749
        %v766 = vmul.f32 %v670, %v750
        %v767 = vmul.f32 %v671, %v751
        %v768 = vmul.f32 %v672, %v752
        %v769 = vmul.f32 %v673, %v753
        %770 = vst [vmem:[#allocation8] sm:$0xff] %v754
        %771 = vst [vmem:[#allocation8 + $0x8] sm:$0xff] %v755
        %772 = vst [vmem:[#allocation8 + $0x10] sm:$0xff] %v756
        %773 = vst [vmem:[#allocation8 + $0x18] sm:$0xff] %v757
        %774 = vst [vmem:[#allocation8 + $0x20] sm:$0xff] %v758
        %775 = vst [vmem:[#allocation8 + $0x28] sm:$0xff] %v759
        %776 = vst [vmem:[#allocation8 + $0x30] sm:$0xff] %v760
        %777 = vst [vmem:[#allocation8 + $0x38] sm:$0xff] %v761
        %778 = vst [vmem:[#allocation8 + $0x40] sm:$0xff] %v762
        %779 = vst [vmem:[#allocation8 + $0x48] sm:$0xff] %v763
        %780 = vst [vmem:[#allocation8 + $0x50] sm:$0xff] %v764
        %781 = vst [vmem:[#allocation8 + $0x58] sm:$0xff] %v765
        %782 = vst [vmem:[#allocation8 + $0x60] sm:$0xff] %v766
        %783 = vst [vmem:[#allocation8 + $0x68] sm:$0xff] %v767
        %784 = vst [vmem:[#allocation8 + $0x70] sm:$0xff] %v768
        %785 = vst [vmem:[#allocation8 + $0x78] sm:$0xff] %v769
        // Predicated region
        $region53: #{tpu_custom_call.1} parent=35 // pred_check
          %p786 = pneg %p125
        $region54: #{tpu_custom_call.1} parent=35 // pred_check_branch
          %788 = sbr.rel (%p786) target = $region56
        $region55: #{tpu_custom_call.1} parent=35 // pred_region
          %s790 = ssub.s32 2048, 2048
          %791 = vsyncadd [#allocation4], %s790
          %s792 = sshll.u32 [#allocation8], 4
          %s793 = int_to_ptr.vmem [resolvable:$true] %s792
          %798 = dma.vmem_to_hbm [thread:$0]  %s793, 2048, %s4, [#allocation4], 128, 128, 8
        $region56: #{tpu_custom_call.1} parent=35 // pred_fallthru
          _
        // Predicated region
        $region57: #{tpu_custom_call.1} parent=35 // pred_check
          %p799 = pneg %p125
        $region58: #{tpu_custom_call.1} parent=35 // pred_check_branch
          %801 = sbr.rel (%p799) target = $region60
        $region59: #{tpu_custom_call.1} parent=35 // pred_region
          %802 = dma.done [#allocation4], 2048
        $region60: #{tpu_custom_call.1} parent=35 // pred_fallthru
          _
      $region36: #{tpu_custom_call.1} parent=5 // pred_fallthru
        _
      %p803 = scmp.le.s32.totalorder 2, %s13
      // Predicated region
      $region61: #{tpu_custom_call.1} parent=5 // pred_check
        %p804 = pneg %p803
      $region62: #{tpu_custom_call.1} parent=5 // pred_check_branch
        %806 = sbr.rel (%p804) target = $region64
      $region63: #{tpu_custom_call.1} parent=5 // pred_region
        %s807 = ssub.s32 %s13, 2
      $region64: #{tpu_custom_call.1} parent=5 // pred_fallthru
        _
    $region6: #{tpu_custom_call.1} parent=1 // loop_footer
      %s17 = sadd.s32 1, %s13
    $region7: #{tpu_custom_call.1} parent=1 // loop_footer_branch
      %12 = sbr.rel target = $region3
    $region8: #{tpu_custom_call.1} parent=1 // loop_exit
      _
    %808 = vsyncpa [#allocation3], 1
    %s809 = scalar_lea.sflag [#allocation3], 1
    %810 = vsyncpa %s809, 1
    %811 = vsyncpa [#allocation6], 1
    %812 = vsyncpa [#allocation4], 1
    %s813 = scalar_lea.sflag [#allocation4], 1
    %814 = vsyncpa %s813, 1

</llo_original>
